<compile_context>
chip_gen: v5e
topology: v5e:2x2
jax: 0.10.0
libtpu: 0.0.40
codegen_flags: <defaults>
</compile_context>

<pallas_src>
import math
from functools import partial

import jax
import jax.numpy as jnp
from jax.experimental import pallas as pl
from jax.experimental.pallas import tpu as pltpu


_LANE = 128                       # vreg lane width (last-dim granularity)
_TARGET_BLOCK_BYTES = 4 << 20     # ~4 MiB x/out blocks (v7x per-step overhead)
_PE_SLAB_BYTES = 4 << 20          # cap on the resident pe slab per column tile
_MIN_STEPS = 4                    # minimum grid depth for pipelining/megacore
_VMEM_LIMIT = 48 << 20            # worst-case working set ~24 MiB; headroom


def _sublane(itemsize: int) -> int:
    # Native packed sublane tile: 8 for f32, 16 for bf16, 32 for int8/fp8.
    return max(8, 32 // itemsize)


# ----------------------------------------------------------------------------
# Parameter setup (plain JAX glue): deterministic sinusoidal table, exactly as
# in the PyTorch __init__.  (Assumes even d_model, same as the original.)
# ----------------------------------------------------------------------------
def make_pe_table(d_model: int, max_len: int = 512, dtype=jnp.float32) -> jnp.ndarray:
    position = jnp.arange(max_len, dtype=jnp.float32)[:, None]            # (max_len, 1)
    div = jnp.exp(
        jnp.arange(0, d_model, 2, dtype=jnp.float32) * (-math.log(10000.0) / d_model)
    )                                                                      # (d_model//2,)
    angles = position * div                                                # (max_len, d_model//2)
    pe = jnp.zeros((max_len, d_model), dtype=jnp.float32)
    pe = pe.at[:, 0::2].set(jnp.sin(angles))
    pe = pe.at[:, 1::2].set(jnp.cos(angles))
    return pe.astype(dtype)                                                # (max_len, d_model)


# ----------------------------------------------------------------------------
# Kernels
# ----------------------------------------------------------------------------
def _pe_add_bcast_kernel(x_ref, pe_ref, o_ref):
    # x_ref/o_ref: (TB, CH) tile of flattened (B, S*D); pe_ref: (1, CH) tile.
    # pe broadcasts over the batch (sublane) axis.
    o_ref[...] = x_ref[...] + pe_ref[...]


def _pe_add_rows_kernel(x_ref, pe_ref, o_ref, *, tr: int, s: int):
    # x_ref/o_ref: (TR, CH) tile of flattened (B*S, D) rows.
    # pe_ref: (S, CH) resident slab of the pe table (rows 0..S).
    if tr == s:
        # Row block == one full pe period: static slice, no dynamic indexing.
        o_ref[...] = x_ref[...] + pe_ref[...]
    else:
        r = pl.program_id(1)                       # inner (row) grid axis
        start = pl.multiple_of((r * tr) % s, tr)   # aligned: tr | s
        o_ref[...] = x_ref[...] + pe_ref[pl.ds(start, tr), :]


# ----------------------------------------------------------------------------
# Tiling heuristics
# ----------------------------------------------------------------------------
def _choose_tiles_flat(B, F, itemsize, sub,
                       target_bytes=_TARGET_BLOCK_BYTES, min_steps=_MIN_STEPS):
    """Blocks for the flattened (B, F) layout (fallback path)."""
    max_cols = max(_LANE, target_bytes // (sub * itemsize))
    cols = F if F <= max_cols else (max_cols // _LANE) * _LANE

    rows_target = max(sub, target_bytes // (cols * itemsize))
    if B <= sub or B <= rows_target:
        rows = B                                    # full extent
    else:
        rows = (min(rows_target, B) // sub) * sub   # sublane-dense

    # Guarantee minimum grid depth on medium+ problems (pipelining / megacore).
    n_row = -(-B // rows)
    n_col = -(-F // cols)
    total_bytes = B * F * itemsize
    if n_row * n_col < min_steps and total_bytes >= (2 << 20) and F >= min_steps * _LANE:
        need_col = -(-min_steps // n_row)
        new_cols = max(_LANE, ((F // need_col) // _LANE) * _LANE)
        cols = min(cols, new_cols)
    return rows, cols


def _choose_tiles_rows(B, S, D, itemsize, sub,
                       target_bytes=_TARGET_BLOCK_BYTES, min_steps=_MIN_STEPS,
                       pe_slab_bytes=_PE_SLAB_BYTES):
    """Blocks for the (B*S, D) layout (small-batch path). Returns (TR, CH)."""
    R = B * S
    # Columns: full D if both the x block and the (S, CH) pe slab fit budget,
    # else a large multiple of 128.
    max_cols_pe = max(_LANE, pe_slab_bytes // (S * itemsize))
    max_cols_x = max(_LANE, target_bytes // (sub * itemsize))
    max_cols = min(max_cols_pe, max_cols_x)
    cols = D if D <= max_cols else (max_cols // _LANE) * _LANE
    n_col = -(-D // cols)

    rows_cap = max(sub, target_bytes // (cols * itemsize))
    total_bytes = R * D * itemsize
    min_row_steps = 1 if total_bytes < (2 << 20) else max(1, -(-min_steps // n_col))

    # Largest divisor of S that is a multiple of the sublane size, within the
    # byte cap, while keeping enough row steps for pipelining/megacore.
    tr = sub
    for k in range(S // sub, 0, -1):
        cand = sub * k
        if S % cand != 0 or cand > rows_cap:
            continue
        if (R // cand) < min(min_row_steps, R // sub):
            continue
        tr = cand
        break
    return tr, cols


# ----------------------------------------------------------------------------
# Forward wrapper
# ----------------------------------------------------------------------------
@partial(jax.jit, static_argnames=("in_place",))
def positional_encoding_forward(x: jnp.ndarray, pe_table: jnp.ndarray,
                                *, in_place: bool = False) -> jnp.ndarray:
    """x: (B, S, D); pe_table: (max_len, D), max_len >= S.  Returns x + pe[:S]."""
    B, S, D = x.shape
    max_len = pe_table.shape[0]
    assert S <= max_len, "sequence length exceeds positional-encoding table"

    dtype = x.dtype
    if pe_table.dtype != dtype:
        pe_table = pe_table.astype(dtype)          # no-op when table pre-built in dtype
    itemsize = dtype.itemsize
    sub = _sublane(itemsize)

    io_alias = {0: 0} if in_place else {}
    cparams = pltpu.CompilerParams(
        dimension_semantics=("parallel", "parallel"),
        vmem_limit_bytes=_VMEM_LIMIT,
    )
    cost = pl.CostEstimate(
        flops=B * S * D,
        transcendentals=0,
        bytes_accessed=(2 * B * S * D + S * D) * itemsize,
    )

    use_row_layout = (
        B < sub                                   # sublane-sparse in (B, S*D) layout
        and D % _LANE == 0                        # lane-dense rows
        and S % sub == 0                          # row tile can divide S
        and S * _LANE * itemsize <= _PE_SLAB_BYTES  # pe slab fits VMEM budget
    )

    if use_row_layout:
        # --- Small-batch path: dense (B*S, D) rows, resident pe slab. -------
        R = B * S
        xr = x.reshape(R, D)                       # free row-major collapse
        TR, CH = _choose_tiles_rows(B, S, D, itemsize, sub)
        n_col = -(-D // CH)
        n_row = R // TR                            # TR | S | R

        out = pl.pallas_call(
            partial(_pe_add_rows_kernel, tr=TR, s=S),
            out_shape=jax.ShapeDtypeStruct((R, D), dtype),
            # Column axis outer, row axis inner: the (S, CH) pe slab's block
            # index is constant across the inner loop -> DMA'd once per column
            # tile and kept resident while x/out stream.
            grid=(n_col, n_row),
            in_specs=[
                pl.BlockSpec((TR, CH), lambda c, r: (r, c)),   # x rows
                pl.BlockSpec((S, CH), lambda c, r: (0, c)),    # pe slab (resident)
            ],
            out_specs=pl.BlockSpec((TR, CH), lambda c, r: (r, c)),
            compiler_params=cparams,
            input_output_aliases=io_alias,
            cost_estimate=cost,
        )(xr, pe_table)
        return out.reshape(B, S, D)

    # --- Fallback path: lane-dense (B, S*D) layout. -------------------------
    F = S * D
    x2 = x.reshape(B, F)
    pe2 = pe_table[:S, :].reshape(1, F)
    TB, CH = _choose_tiles_flat(B, F, itemsize, sub)
    n_col = -(-F // CH)
    n_row = -(-B // TB)

    out2 = pl.pallas_call(
        _pe_add_bcast_kernel,
        out_shape=jax.ShapeDtypeStruct((B, F), dtype),
        grid=(n_col, n_row),
        in_specs=[
            pl.BlockSpec((TB, CH), lambda c, r: (r, c)),       # x tile
            pl.BlockSpec((1, CH), lambda c, r: (0, c)),        # pe tile (resident)
        ],
        out_specs=pl.BlockSpec((TB, CH), lambda c, r: (r, c)),
        compiler_params=cparams,
        input_output_aliases=io_alias,
        cost_estimate=cost,
    )(x2, pe2)
    return out2.reshape(B, S, D)


if __name__ == "__main__":
    key = jax.random.PRNGKey(0)

    # 1) Small demo shape consistent with the module (fallback path, 1 step).
    B, S, D = 2, 8, 32
    MAX_LEN = 512
    x = jax.random.normal(key, (B, S, D), dtype=jnp.float32)
    pe_table = make_pe_table(D, max_len=MAX_LEN, dtype=jnp.float32)
    out = jax.block_until_ready(positional_encoding_forward(x, pe_table))
    ref = x + pe_table[None, :S, :]
    assert out.shape == (B, S, D)
    assert jnp.allclose(out, ref, atol=1e-6, rtol=1e-6)

    # 2) Small batch, lane-aligned D: exercises the (B*S, D) path with
    #    multiple row steps and in-kernel pe slab slicing (TR < S).
    B2, S2, D2 = 2, 512, 512
    x2 = jax.random.normal(jax.random.PRNGKey(1), (B2, S2, D2), dtype=jnp.float32)
    pe_table2 = make_pe_table(D2, max_len=512, dtype=jnp.float32)
    out2 = jax.block_until_ready(positional_encoding_forward(x2, pe_table2))
    ref2 = x2 + pe_table2[None, :S2, :]
    assert out2.shape == (B2, S2, D2)
    assert jnp.allclose(out2, ref2, atol=1e-6, rtol=1e-6)

    # 3) bf16: dtype-aware sublane rounding + pre-cast pe table (no per-call cast).
    B3, S3, D3 = 2, 64, 128
    x3 = jax.random.normal(jax.random.PRNGKey(2), (B3, S3, D3), dtype=jnp.bfloat16)
    pe_table3 = make_pe_table(D3, max_len=512, dtype=jnp.bfloat16)
    out3 = jax.block_until_ready(positional_encoding_forward(x3, pe_table3))
    ref3 = x3 + pe_table3[None, :S3, :]
    assert out3.shape == (B3, S3, D3)
    assert jnp.allclose(out3.astype(jnp.float32), ref3.astype(jnp.float32),
                        atol=1e-2, rtol=1e-2)

    print("KERNEL_OK")
</pallas_src>

<mosaic_0001>
module attributes {stable_mosaic.version = 11 : i64} {
  func.func @_pe_add_bcast_kernel(%arg0: i32, %arg1: i32, %arg2: memref<2x256xf32, #tpu.memory_space<vmem>>, %arg3: memref<1x256xf32, #tpu.memory_space<vmem>>, %arg4: memref<2x256xf32, #tpu.memory_space<vmem>>) attributes {dimension_semantics = [#tpu.dimension_semantics<parallel>, #tpu.dimension_semantics<parallel>], iteration_bounds = array<i64: 1, 1>, scalar_prefetch = 0 : i64, scratch_operands = 0 : i64, tpu.core_type = #tpu.core_type<tc>, window_params = [{transform_indices = @transform_0, window_bounds = array<i64: 2, 256>}, {transform_indices = @transform_1, window_bounds = array<i64: 1, 256>}, {transform_indices = @transform_2, window_bounds = array<i64: 2, 256>}]} {
    %c0 = arith.constant 0 : index
    %c0_0 = arith.constant 0 : index
    %0 = vector.load %arg2[%c0, %c0_0] : memref<2x256xf32, #tpu.memory_space<vmem>>, vector<2x256xf32>
    %c0_1 = arith.constant 0 : index
    %c0_2 = arith.constant 0 : index
    %1 = vector.load %arg3[%c0_1, %c0_2] : memref<1x256xf32, #tpu.memory_space<vmem>>, vector<1x256xf32>
    %2 = vector.broadcast %1 : vector<1x256xf32> to vector<2x256xf32>
    %3 = arith.addf %0, %2 : vector<2x256xf32>
    %c0_3 = arith.constant 0 : index
    %c0_4 = arith.constant 0 : index
    %4 = vector.load %arg4[%c0_3, %c0_4] : memref<2x256xf32, #tpu.memory_space<vmem>>, vector<2x256xf32>
    tpu.vector_store %arg4[%c0_3, %c0_4], %3 {strides = array<i32>} : memref<2x256xf32, #tpu.memory_space<vmem>>, vector<2x256xf32>,
    return
  }
  func.func @transform_0(%arg0: i32, %arg1: i32) -> (i32, i32) {
    %c0_i32 = arith.constant 0 : i32
    return %arg1, %arg0 : i32, i32
  }
  func.func @transform_1(%arg0: i32, %arg1: i32) -> (i32, i32) {
    %c0_i32 = arith.constant 0 : i32
    %c0_i32_0 = arith.constant 0 : i32
    return %c0_i32, %arg0 : i32, i32
  }
  func.func @transform_2(%arg0: i32, %arg1: i32) -> (i32, i32) {
    %c0_i32 = arith.constant 0 : i32
    return %arg1, %arg0 : i32, i32
  }
}

</mosaic_0001>

<llo_original>
// kernel: positional_encoding_forward.1
$region0: #{positional_encoding_forward.1}
  #allocation0 [shape = 'u32[]', space=smem, size = 0x4, offset = 0x4, fixed_abs, tag = 'smem constant byte address 0x4 - core index']
  #allocation1 [shape = 'u32[72,128]{1,0:T(1,128)}', space=vmem, size = 0x9000, scoped, tag = 'internal scratch']
  %s0 = inlined_call_operand.vmem [shape: f32[2,256], index: 0, kind: input, shape index: {}]
  %s1 = inlined_call_operand.vmem [shape: f32[1,256], index: 1, kind: input, shape index: {}]
  %s2 = inlined_call_operand.vmem [shape: f32[2,256], index: 2, kind: output, shape index: {}]
  %s3 = sld [smem:[#allocation0]]
  $region18: #{positional_encoding_forward.1} parent=0
    _
  %s5 = ssub.s32 1, %s3
  %s6 = scalar_select 0, %s5, %s3
  // Predicated region
  $region2: #{positional_encoding_forward.1} parent=0 // pred_check
    _
  $region3: #{positional_encoding_forward.1} parent=0 // pred_check_branch
    %8 = sbr.rel (0) target = $region5
  $region4: #{positional_encoding_forward.1} parent=0 // pred_region
    _
  $region5: #{positional_encoding_forward.1} parent=0 // pred_fallthru
    _
  // Predicated region
  $region6: #{positional_encoding_forward.1} parent=0 // pred_check
    _
  $region7: #{positional_encoding_forward.1} parent=0 // pred_check_branch
    %10 = sbr.rel (0) target = $region9
  $region8: #{positional_encoding_forward.1} parent=0 // pred_region
    _
  $region9: #{positional_encoding_forward.1} parent=0 // pred_fallthru
    _
  %v11 = vld [vmem:[%s0] sm:$0xf]
  %v12 = vld [vmem:[%s1] sm:$0x3]
  %v14 = vperm.slane %v12, 0
  %v15 = vperm.slane %v12, 1
  %v16 = vrot.slane %v15, 6
  %vm17 = vcmask 1041408
  %v18 = vsel %vm17, %v14, %v16
  %v20 = vadd.f32 %v11, %v18
  %21 = vst [vmem:[%s2] sm:$0xf] %v20
  // Predicated region
  $region10: #{positional_encoding_forward.1} parent=0 // pred_check
    _
  $region11: #{positional_encoding_forward.1} parent=0 // pred_check_branch
    %23 = sbr.rel (0) target = $region13
  $region12: #{positional_encoding_forward.1} parent=0 // pred_region
    _
  $region13: #{positional_encoding_forward.1} parent=0 // pred_fallthru
    _
  // Predicated region
  $region14: #{positional_encoding_forward.1} parent=0 // pred_check
    _
  $region15: #{positional_encoding_forward.1} parent=0 // pred_check_branch
    %25 = sbr.rel (0) target = $region17
  $region16: #{positional_encoding_forward.1} parent=0 // pred_region
    _
  $region17: #{positional_encoding_forward.1} parent=0 // pred_fallthru
    _

</llo_original>
